<compile_context>
chip_gen: v6e
topology: v6e:2x2x1
jax: 0.10.0
libtpu: 0.0.40
codegen_flags: <defaults>
</compile_context>

<pallas_src>
import jax
import jax.numpy as jnp
from jax.experimental import pallas as pl
from jax.experimental.pallas import tpu as pltpu


_LANES = 128
_SUBLANES = 8


def identity_kernel(x_ref, o_ref):
    # Entire forward pass of Net: pass the tile through unchanged.
    o_ref[...] = x_ref[...]


def _pick_row_tile(rows: int) -> int:
    """Largest multiple-of-8 row tile <= 512 that divides `rows`.

    512-row tiles reach ~85% of HBM roofline for copy-style kernels; tile
    bytes (512*128*4 = 256 KiB) x 2 arrays x 2 pipeline buffers = 1 MiB,
    comfortably within v7x's 32 MiB default scoped VMEM.
    """
    for t in (512, 256, 128, 64, 32, 16, 8):
        if rows % t == 0:
            return t
    return rows


def _pallas_identity_impl(x: jax.Array) -> jax.Array:
    nbytes = x.size * x.dtype.itemsize
    cost = pl.CostEstimate(flops=0, transcendentals=0, bytes_accessed=2 * nbytes)

    if x.size % (_SUBLANES * _LANES) == 0 and x.size > 0:
        # Lane-dense tiled path: (rows, 128) view, grid over rows.
        rows = x.size // _LANES
        tile = _pick_row_tile(rows)
        flat = x.reshape(rows, _LANES)
        out = pl.pallas_call(
            identity_kernel,
            out_shape=jax.ShapeDtypeStruct(flat.shape, flat.dtype),
            grid=(rows // tile,),
            in_specs=[pl.BlockSpec((tile, _LANES), lambda i: (i, 0))],
            out_specs=pl.BlockSpec((tile, _LANES), lambda i: (i, 0)),
            compiler_params=pltpu.CompilerParams(
                dimension_semantics=("parallel",)  # lets v7x's 2 TCs split the grid
            ),
            cost_estimate=cost,
        )(flat)
        return out.reshape(x.shape)

    # Fallback for tiny / unaligned shapes (e.g. the spec's (2, 3, 4)):
    # single full-array block — the (8,128) rule does not apply when the block
    # equals the array, and at this size layout is irrelevant.
    flat = x.reshape(1, x.size)
    out = pl.pallas_call(
        identity_kernel,
        out_shape=jax.ShapeDtypeStruct(flat.shape, flat.dtype),
        in_specs=[pl.BlockSpec(flat.shape, lambda: (0, 0))],
        out_specs=pl.BlockSpec(flat.shape, lambda: (0, 0)),
        cost_estimate=cost,
    )(flat)
    return out.reshape(x.shape)


_pallas_identity = jax.jit(_pallas_identity_impl)


def net_forward(x: jax.Array, *, use_pallas: bool = False) -> jax.Array:
    """Net.forward(x) == x.

    Default (recommended) path: return x directly — zero device work, optimal
    on every TPU generation.  `use_pallas=True` exercises the placeholder
    Pallas copy kernel (jitted, tiled, lane-dense when the shape allows).
    """
    if not use_pallas:
        return x
    return _pallas_identity(x)
    # TODO(synk): if Net ever gains real compute, replace identity_kernel with
    # the actual math; the tiling/grid scaffolding above already budgets VMEM
    # for v7x and splits the grid across its two TensorCores.


if __name__ == "__main__":
    key = jax.random.PRNGKey(0)
    k1, k2 = jax.random.split(key)

    # Matches the shape used in the PyTorch script: torch.randn(2, 3, 4).
    x = jax.random.normal(k1, (2, 3, 4), dtype=jnp.float32)
    # A second, (8*128)-aligned input to exercise the tiled/gridded path.
    x_tiled = jax.random.normal(k2, (16, 64, 128), dtype=jnp.float32)

    # Fast path (the real implementation): no kernel at all.
    y_fast = net_forward(x)
    # Placeholder Pallas kernel paths.
    y_small = net_forward(x, use_pallas=True)
    y_big = net_forward(x_tiled, use_pallas=True)
    jax.block_until_ready((y_fast, y_small, y_big))

    assert y_fast.shape == x.shape and y_fast.dtype == x.dtype
    assert y_small.shape == x.shape and y_small.dtype == x.dtype
    assert y_big.shape == x_tiled.shape and y_big.dtype == x_tiled.dtype
    assert jnp.array_equal(y_fast, x), "fast path must return input unchanged"
    assert jnp.array_equal(y_small, x), "pallas identity (small path) mismatch"
    assert jnp.array_equal(y_big, x_tiled), "pallas identity (tiled path) mismatch"
    print("KERNEL_OK")
</pallas_src>

<mosaic_0001>
module attributes {stable_mosaic.version = 11 : i64} {
  func.func @identity_kernel(%arg0: memref<1x24xf32, #tpu.memory_space<vmem>>, %arg1: memref<1x24xf32, #tpu.memory_space<vmem>>) attributes {dimension_semantics = [], scalar_prefetch = 0 : i64, scratch_operands = 0 : i64, tpu.core_type = #tpu.core_type<tc>} {
    %c0 = arith.constant 0 : index
    %c0_0 = arith.constant 0 : index
    %0 = vector.load %arg0[%c0, %c0_0] : memref<1x24xf32, #tpu.memory_space<vmem>>, vector<1x24xf32>
    %c0_1 = arith.constant 0 : index
    %c0_2 = arith.constant 0 : index
    %1 = vector.load %arg1[%c0_1, %c0_2] : memref<1x24xf32, #tpu.memory_space<vmem>>, vector<1x24xf32>
    tpu.vector_store %arg1[%c0_1, %c0_2], %0 {strides = array<i32>} : memref<1x24xf32, #tpu.memory_space<vmem>>, vector<1x24xf32>,
    return
  }
}

</mosaic_0001>

<llo_original>
// kernel: _pallas_identity_impl.1
$region0: #{_pallas_identity_impl.1}
  #allocation0 [shape = 'u32[]', space=smem, size = 0x4, offset = 0x4, fixed_abs, tag = 'smem constant byte address 0x4 - core index']
  #allocation1 [shape = 'u32[144,128]{1,0:T(1,128)}', space=vmem, size = 0x12000, scoped, tag = 'internal scratch']
  %s0 = inlined_call_operand.vmem [shape: f32[1,24], index: 0, kind: input, shape index: {}]
  %s1 = inlined_call_operand.vmem [shape: f32[1,24], index: 1, kind: output, shape index: {}]
  %s2 = sld [smem:[#allocation0]]
  $region14: #{_pallas_identity_impl.1} parent=0
    _
  %s4 = ssub.s32 1, %s2
  %s5 = scalar_select 0, %s4, %s2
  // Predicated region
  $region2: #{_pallas_identity_impl.1} parent=0 // pred_check
    _
  $region3: #{_pallas_identity_impl.1} parent=0 // pred_check_branch
    %7 = sbr.rel (0) target = $region5
  $region4: #{_pallas_identity_impl.1} parent=0 // pred_region
    _
  $region5: #{_pallas_identity_impl.1} parent=0 // pred_fallthru
    _
  %v8 = vld [vmem:[%s0] sm:$0x1]
  %vm9 = vcmask 188416
  %10 = vst.msk [vmem:[%s1] sm:$0x1] %vm9, %v8
  // Predicated region
  $region6: #{_pallas_identity_impl.1} parent=0 // pred_check
    _
  $region7: #{_pallas_identity_impl.1} parent=0 // pred_check_branch
    %12 = sbr.rel (0) target = $region9
  $region8: #{_pallas_identity_impl.1} parent=0 // pred_region
    _
  $region9: #{_pallas_identity_impl.1} parent=0 // pred_fallthru
    _
  // Predicated region
  $region10: #{_pallas_identity_impl.1} parent=0 // pred_check
    _
  $region11: #{_pallas_identity_impl.1} parent=0 // pred_check_branch
    %14 = sbr.rel (0) target = $region13
  $region12: #{_pallas_identity_impl.1} parent=0 // pred_region
    _
  $region13: #{_pallas_identity_impl.1} parent=0 // pred_fallthru
    _

</llo_original>
